<compile_context>
chip_gen: v5e
topology: v5e:2x2
jax: 0.10.0
libtpu: 0.0.40
codegen_flags: <defaults>
</compile_context>

<pallas_src>
import math
import functools

import jax
import jax.numpy as jnp
import numpy as np
from jax.experimental import pallas as pl
from jax.experimental.pallas import tpu as pltpu


# ----------------------------- Pallas kernel ---------------------------------

def _ffn_layer_kernel(x_ref, w1_ref, b1_ref, w2_ref, b2_ref,
                      gamma_ref, beta_ref, o_ref, acc_ref, *, eps):
    # x_ref:   (bm, E)  bf16  (resident across the F axis; reused for residual)
    # w1_ref:  (E, bf)  bf16   b1_ref: (1, bf) f32
    # w2_ref:  (bf, E)  bf16   b2_ref / gamma_ref / beta_ref: (1, E) f32
    # acc_ref: (bm, E)  f32 VMEM accumulator over the F (hidden) axis
    f = pl.program_id(1)

    @pl.when(f == 0)
    def _init():
        acc_ref[...] = jnp.zeros_like(acc_ref)

    # linear1 chunk + relu (bf16 MXU operands, f32 accumulation); dropout == 0
    h = jnp.dot(x_ref[...], w1_ref[...],
                preferred_element_type=jnp.float32) + b1_ref[...]
    h = jnp.maximum(h, 0.0)

    # linear2 chunk, accumulated into the f32 scratch
    acc_ref[...] += jnp.dot(h.astype(jnp.bfloat16), w2_ref[...],
                            preferred_element_type=jnp.float32)

    @pl.when(f == pl.num_programs(1) - 1)
    def _finalize():
        x = x_ref[...].astype(jnp.float32)
        y = x + acc_ref[...] + b2_ref[...]                 # residual (dropout == 0)
        # one-pass LayerNorm statistics: var = E[y^2] - mu^2
        mu = jnp.mean(y, axis=-1, keepdims=True)
        ms = jnp.mean(y * y, axis=-1, keepdims=True)
        var = jnp.maximum(ms - mu * mu, 0.0)
        yn = (y - mu) * jax.lax.rsqrt(var + eps)
        o_ref[...] = (yn * gamma_ref[...] + beta_ref[...]).astype(o_ref.dtype)


# ----------------------------- tiling heuristics -------------------------------

def _round_up(x, m):
    return ((x + m - 1) // m) * m


def _vmem_bytes(block_m, E, block_f, grid_f):
    wbuf = 1 if grid_f == 1 else 2                    # weight-chunk buffering
    weights = wbuf * 2 * (E * block_f * 2)            # w1 + w2 chunks, bf16
    biases = wbuf * block_f * 4 + 3 * E * 4           # b1 chunk + b2/gamma/beta
    x_io = 2 * block_m * E * 2                        # x, bf16, double buffered
    out_io = 2 * block_m * E * 4                      # out, f32, double buffered
    acc = block_m * E * 4                             # f32 accumulator scratch
    hidden = block_m * block_f * 4                    # live f32 intermediate headroom
    return weights + biases + x_io + out_io + acc + hidden


def _choose_block_f(F):
    # Tile the hidden dim so the live f32 (block_m, block_f) intermediate stays
    # near vreg-file size and resident weight slabs stay small (v7x: 64 MiB VMEM).
    for cand in (1024, 512, 256):
        if F > cand and F % cand == 0:
            return cand
    return F


def _choose_block_m(T, E, block_f, grid_f):
    # Small problems: a single grid step (splitting tiny work across the two
    # v7x TensorCores just duplicates the weight DMA).
    if T <= 256:
        return max(16, _round_up(T, 16))
    # Large problems: biggest 16-aligned tile <= 256 that fits the VMEM budget
    # (conservative budget so it also fits v7x's 64 MiB / 32 MiB-scoped VMEM).
    budget = 24 << 20
    bm = 256
    while bm > 16 and _vmem_bytes(bm, E, block_f, grid_f) > budget:
        bm //= 2
    return max(16, bm)


# ------------------------------- wrapper --------------------------------------

def ffn_layer(tgt, params, *, block_m=None, block_f=None, eps=1e-5):
    """tgt: (L, N, E) float32. Returns (L, N, E) float32."""
    L, N, E = tgt.shape
    T = L * N
    # Token-independent FFN: flatten (L, N, E) -> (T, E) row-major (free
    # reshape) and DMA activations as bf16 (memory-bound regime: halves the
    # HBM read).  Residual / LayerNorm are done in f32 inside the kernel.
    x = tgt.reshape(T, E).astype(jnp.bfloat16)

    w1 = params["w1"].astype(jnp.bfloat16)          # (E, F)
    w2 = params["w2"].astype(jnp.bfloat16)          # (F, E)
    b1, b2 = params["b1"], params["b2"]             # (1, F), (1, E) f32
    gamma, beta = params["gamma"], params["beta"]   # (1, E) f32
    Fdim = w1.shape[1]

    if block_f is None:
        block_f = _choose_block_f(Fdim)
    assert Fdim % block_f == 0
    grid_f = Fdim // block_f

    if block_m is None:
        block_m = _choose_block_m(T, E, block_f, grid_f)
    grid_m = pl.cdiv(T, block_m)
    T_pad = grid_m * block_m
    if T_pad != T:
        # TODO(synk): a masked tail store would avoid this extra HBM copy of x.
        x = jnp.pad(x, ((0, T_pad - T), (0, 0)))

    kernel = functools.partial(_ffn_layer_kernel, eps=eps)

    resident = pl.Buffered(1)   # constant index_map -> double-buffering buys nothing
    x_spec = pl.BlockSpec((block_m, E), lambda i, f: (i, 0))
    o_spec = pl.BlockSpec((block_m, E), lambda i, f: (i, 0))
    if grid_f == 1:
        w1_spec = pl.BlockSpec((E, block_f), lambda i, f: (0, f), pipeline_mode=resident)
        b1_spec = pl.BlockSpec((1, block_f), lambda i, f: (0, f), pipeline_mode=resident)
        w2_spec = pl.BlockSpec((block_f, E), lambda i, f: (f, 0), pipeline_mode=resident)
    else:
        # weight chunks change along the F axis -> keep default double buffering
        w1_spec = pl.BlockSpec((E, block_f), lambda i, f: (0, f))
        b1_spec = pl.BlockSpec((1, block_f), lambda i, f: (0, f))
        w2_spec = pl.BlockSpec((block_f, E), lambda i, f: (f, 0))
    be_spec = pl.BlockSpec((1, E), lambda i, f: (0, 0), pipeline_mode=resident)

    vmem_est = _vmem_bytes(block_m, E, block_f, grid_f)
    vmem_limit = int(min(max(2 * vmem_est, 32 << 20), 56 << 20))

    out = pl.pallas_call(
        kernel,
        out_shape=jax.ShapeDtypeStruct((T_pad, E), jnp.float32),
        grid_spec=pltpu.PrefetchScalarGridSpec(
            num_scalar_prefetch=0,
            grid=(grid_m, grid_f),
            in_specs=[x_spec, w1_spec, b1_spec, w2_spec, be_spec, be_spec, be_spec],
            out_specs=o_spec,
            scratch_shapes=[pltpu.VMEM((block_m, E), jnp.float32)],
        ),
        compiler_params=pltpu.CompilerParams(
            dimension_semantics=("parallel", "arbitrary"),
            vmem_limit_bytes=vmem_limit),
    )(x, w1, b1, w2, b2, gamma, beta)

    return out[:T].reshape(L, N, E)


# -------------------------- deterministic params -------------------------------

def _xavier_uniform(key, shape):
    fan_out, fan_in = shape
    bound = math.sqrt(6.0 / (fan_in + fan_out))
    return jax.random.uniform(key, shape, jnp.float32, -bound, bound)


def make_params(key, d_model, dim_feedforward):
    k1, k2, k3, k4, k5, k6 = jax.random.split(key, 6)
    # torch-style: linear1.weight (F, E), linear2.weight (E, F); xavier init on
    # weights (dim > 1).  Biases / LN params get small random values so the
    # bias / affine paths are exercised.
    lin1_w = _xavier_uniform(k1, (dim_feedforward, d_model))   # (F, E)
    lin2_w = _xavier_uniform(k2, (d_model, dim_feedforward))   # (E, F)
    return {
        # transposed so the kernel computes x @ W == x @ weight.T (torch linear)
        "w1": lin1_w.T,                                                    # (E, F)
        "b1": 0.1 * jax.random.normal(k3, (1, dim_feedforward), jnp.float32),
        "w2": lin2_w.T,                                                    # (F, E)
        "b2": 0.1 * jax.random.normal(k4, (1, d_model), jnp.float32),
        "gamma": 1.0 + 0.1 * jax.random.normal(k5, (1, d_model), jnp.float32),
        "beta": 0.1 * jax.random.normal(k6, (1, d_model), jnp.float32),
    }


# ------------------------------ pure-JAX reference ------------------------------

def reference(tgt, params, eps=1e-5):
    L, N, E = tgt.shape
    x = tgt.reshape(L * N, E)
    h = jnp.maximum(x @ params["w1"] + params["b1"], 0.0)
    y = x + (h @ params["w2"] + params["b2"])
    mu = jnp.mean(y, -1, keepdims=True)
    var = jnp.mean((y - mu) ** 2, -1, keepdims=True)
    out = (y - mu) / jnp.sqrt(var + eps) * params["gamma"] + params["beta"]
    return out.reshape(L, N, E)


# ----------------------------------- main ---------------------------------------

if __name__ == "__main__":
    d_model = 128          # lane-dense (multiple of 128)
    dim_feedforward = 256  # lane-dense hidden
    L, N = 8, 2            # seq len, batch -> 16 tokens total (one 16-row tile)

    key = jax.random.PRNGKey(0)
    k_tgt, k_par = jax.random.split(key, 2)

    tgt = jax.random.normal(k_tgt, (L, N, d_model), jnp.float32)
    params = make_params(k_par, d_model, dim_feedforward)

    out = jax.block_until_ready(ffn_layer(tgt, params))
    ref = jax.block_until_ready(reference(tgt, params))

    # bf16 MXU operands + bf16 activation I/O (intentional) vs. f32 reference.
    np.testing.assert_allclose(np.asarray(out), np.asarray(ref), atol=3e-2, rtol=3e-2)

    print("KERNEL_OK")
</pallas_src>

<mosaic_0001>
module attributes {stable_mosaic.version = 11 : i64} {
  func.func @_ffn_layer_kernel(%arg0: i32, %arg1: i32, %arg2: memref<16x128xbf16, #tpu.memory_space<vmem>>, %arg3: memref<128x256xbf16, #tpu.memory_space<vmem>>, %arg4: memref<1x256xf32, #tpu.memory_space<vmem>>, %arg5: memref<256x128xbf16, #tpu.memory_space<vmem>>, %arg6: memref<1x128xf32, #tpu.memory_space<vmem>>, %arg7: memref<1x128xf32, #tpu.memory_space<vmem>>, %arg8: memref<1x128xf32, #tpu.memory_space<vmem>>, %arg9: memref<16x128xf32, #tpu.memory_space<vmem>>, %arg10: memref<16x128xf32, #tpu.memory_space<vmem>>) attributes {dimension_semantics = [#tpu.dimension_semantics<parallel>, #tpu.dimension_semantics<arbitrary>], iteration_bounds = array<i64: 1, 1>, scalar_prefetch = 0 : i64, scratch_operands = 1 : i64, tpu.core_type = #tpu.core_type<tc>, window_params = [{transform_indices = @transform_0, window_bounds = array<i64: 16, 128>}, {pipeline_mode = #tpu.pipeline_mode<synchronous>, transform_indices = @transform_1, window_bounds = array<i64: 128, 256>}, {pipeline_mode = #tpu.pipeline_mode<synchronous>, transform_indices = @transform_2, window_bounds = array<i64: 1, 256>}, {pipeline_mode = #tpu.pipeline_mode<synchronous>, transform_indices = @transform_3, window_bounds = array<i64: 256, 128>}, {pipeline_mode = #tpu.pipeline_mode<synchronous>, transform_indices = @transform_4, window_bounds = array<i64: 1, 128>}, {pipeline_mode = #tpu.pipeline_mode<synchronous>, transform_indices = @transform_5, window_bounds = array<i64: 1, 128>}, {pipeline_mode = #tpu.pipeline_mode<synchronous>, transform_indices = @transform_6, window_bounds = array<i64: 1, 128>}, {transform_indices = @transform_7, window_bounds = array<i64: 16, 128>}]} {
    %c0_i32 = arith.constant 0 : i32
    %0 = arith.cmpi eq, %arg1, %c0_i32 : i32
    %1 = arith.extui %0 : i1 to i32
    %c0_i32_0 = arith.constant 0 : i32
    %2 = arith.cmpi ne, %1, %c0_i32_0 : i32
    scf.if %2 {
      %cst_16 = arith.constant 0.000000e+00 : f32
      %20 = vector.broadcast %cst_16 : f32 to vector<16x128xf32>
      %c0_17 = arith.constant 0 : index
      %c0_18 = arith.constant 0 : index
      %21 = vector.load %arg10[%c0_17, %c0_18] : memref<16x128xf32, #tpu.memory_space<vmem>>, vector<16x128xf32>
      tpu.vector_store %arg10[%c0_17, %c0_18], %20 {strides = array<i32>} : memref<16x128xf32, #tpu.memory_space<vmem>>, vector<16x128xf32>,
    } else {
    }
    %c0 = arith.constant 0 : index
    %c0_1 = arith.constant 0 : index
    %3 = vector.load %arg2[%c0, %c0_1] : memref<16x128xbf16, #tpu.memory_space<vmem>>, vector<16x128xbf16>
    %c0_2 = arith.constant 0 : index
    %c0_3 = arith.constant 0 : index
    %4 = vector.load %arg3[%c0_2, %c0_3] : memref<128x256xbf16, #tpu.memory_space<vmem>>, vector<128x256xbf16>
    %cst = arith.constant dense<0.000000e+00> : vector<16x256xf32>
    %5 = tpu.matmul %3, %4, %cst {dimension_numbers = #tpu.dot_dimension_numbers<[1], [0], [0], [1], [0, 0, 1, 1], [], []>} : vector<16x128xbf16>, vector<128x256xbf16>, vector<16x256xf32> -> vector<16x256xf32>
    %c0_4 = arith.constant 0 : index
    %c0_5 = arith.constant 0 : index
    %6 = vector.load %arg4[%c0_4, %c0_5] : memref<1x256xf32, #tpu.memory_space<vmem>>, vector<1x256xf32>
    %7 = vector.broadcast %6 : vector<1x256xf32> to vector<16x256xf32>
    %8 = arith.addf %5, %7 : vector<16x256xf32>
    %cst_6 = arith.constant 0.000000e+00 : f32
    %9 = vector.broadcast %cst_6 : f32 to vector<16x256xf32>
    %10 = arith.maximumf %8, %9 : vector<16x256xf32>
    %c0_7 = arith.constant 0 : index
    %c0_8 = arith.constant 0 : index
    %11 = vector.load %arg10[%c0_7, %c0_8] : memref<16x128xf32, #tpu.memory_space<vmem>>, vector<16x128xf32>
    %12 = arith.truncf %10 : vector<16x256xf32> to vector<16x256xbf16>
    %c0_9 = arith.constant 0 : index
    %c0_10 = arith.constant 0 : index
    %13 = vector.load %arg5[%c0_9, %c0_10] : memref<256x128xbf16, #tpu.memory_space<vmem>>, vector<256x128xbf16>
    %cst_11 = arith.constant dense<0.000000e+00> : vector<16x128xf32>
    %14 = tpu.matmul %12, %13, %cst_11 {dimension_numbers = #tpu.dot_dimension_numbers<[1], [0], [0], [1], [0, 0, 1, 1], [], []>} : vector<16x256xbf16>, vector<256x128xbf16>, vector<16x128xf32> -> vector<16x128xf32>
    %15 = arith.addf %11, %14 : vector<16x128xf32>
    %c0_12 = arith.constant 0 : index
    %c0_13 = arith.constant 0 : index
    %16 = vector.load %arg10[%c0_12, %c0_13] : memref<16x128xf32, #tpu.memory_space<vmem>>, vector<16x128xf32>
    tpu.vector_store %arg10[%c0_12, %c0_13], %15 {strides = array<i32>} : memref<16x128xf32, #tpu.memory_space<vmem>>, vector<16x128xf32>,
    %c0_i32_14 = arith.constant 0 : i32
    %17 = arith.cmpi eq, %arg1, %c0_i32_14 : i32
    %18 = arith.extui %17 : i1 to i32
    %c0_i32_15 = arith.constant 0 : i32
    %19 = arith.cmpi ne, %18, %c0_i32_15 : i32
    scf.if %19 {
      %c0_16 = arith.constant 0 : index
      %c0_17 = arith.constant 0 : index
      %20 = vector.load %arg2[%c0_16, %c0_17] : memref<16x128xbf16, #tpu.memory_space<vmem>>, vector<16x128xbf16>
      %21 = arith.extf %20 : vector<16x128xbf16> to vector<16x128xf32>
      %c0_18 = arith.constant 0 : index
      %c0_19 = arith.constant 0 : index
      %22 = vector.load %arg10[%c0_18, %c0_19] : memref<16x128xf32, #tpu.memory_space<vmem>>, vector<16x128xf32>
      %23 = arith.addf %21, %22 : vector<16x128xf32>
      %c0_20 = arith.constant 0 : index
      %c0_21 = arith.constant 0 : index
      %24 = vector.load %arg6[%c0_20, %c0_21] : memref<1x128xf32, #tpu.memory_space<vmem>>, vector<1x128xf32>
      %25 = vector.broadcast %24 : vector<1x128xf32> to vector<16x128xf32>
      %26 = arith.addf %23, %25 : vector<16x128xf32>
      %cst_22 = arith.constant dense<0.000000e+00> : vector<16xf32>
      %27 = vector.multi_reduction <add>, %26, %cst_22 [1] : vector<16x128xf32> to vector<16xf32>
      %28 = vector.shape_cast %27 : vector<16xf32> to vector<16x1xf32>
      %cst_23 = arith.constant 1.280000e+02 : f32
      %29 = vector.broadcast %cst_23 : f32 to vector<16x1xf32>
      %30 = arith.divf %28, %29 : vector<16x1xf32>
      %31 = arith.mulf %26, %26 : vector<16x128xf32>
      %cst_24 = arith.constant dense<0.000000e+00> : vector<16xf32>
      %32 = vector.multi_reduction <add>, %31, %cst_24 [1] : vector<16x128xf32> to vector<16xf32>
      %33 = vector.shape_cast %32 : vector<16xf32> to vector<16x1xf32>
      %cst_25 = arith.constant 1.280000e+02 : f32
      %34 = vector.broadcast %cst_25 : f32 to vector<16x1xf32>
      %35 = arith.divf %33, %34 : vector<16x1xf32>
      %36 = arith.mulf %30, %30 : vector<16x1xf32>
      %37 = arith.subf %35, %36 : vector<16x1xf32>
      %cst_26 = arith.constant 0.000000e+00 : f32
      %38 = vector.broadcast %cst_26 : f32 to vector<16x1xf32>
      %39 = arith.maximumf %37, %38 : vector<16x1xf32>
      %40 = vector.broadcast %30 : vector<16x1xf32> to vector<16x128xf32>
      %41 = arith.subf %26, %40 : vector<16x128xf32>
      %cst_27 = arith.constant 9.99999974E-6 : f32
      %42 = vector.broadcast %cst_27 : f32 to vector<16x1xf32>
      %43 = arith.addf %39, %42 : vector<16x1xf32>
      %44 = math.rsqrt %43 : vector<16x1xf32>
      %45 = vector.broadcast %44 : vector<16x1xf32> to vector<16x128xf32>
      %46 = arith.mulf %41, %45 : vector<16x128xf32>
      %c0_28 = arith.constant 0 : index
      %c0_29 = arith.constant 0 : index
      %47 = vector.load %arg7[%c0_28, %c0_29] : memref<1x128xf32, #tpu.memory_space<vmem>>, vector<1x128xf32>
      %48 = vector.broadcast %47 : vector<1x128xf32> to vector<16x128xf32>
      %49 = arith.mulf %46, %48 : vector<16x128xf32>
      %c0_30 = arith.constant 0 : index
      %c0_31 = arith.constant 0 : index
      %50 = vector.load %arg8[%c0_30, %c0_31] : memref<1x128xf32, #tpu.memory_space<vmem>>, vector<1x128xf32>
      %51 = vector.broadcast %50 : vector<1x128xf32> to vector<16x128xf32>
      %52 = arith.addf %49, %51 : vector<16x128xf32>
      %c0_32 = arith.constant 0 : index
      %c0_33 = arith.constant 0 : index
      %53 = vector.load %arg9[%c0_32, %c0_33] : memref<16x128xf32, #tpu.memory_space<vmem>>, vector<16x128xf32>
      tpu.vector_store %arg9[%c0_32, %c0_33], %52 {strides = array<i32>} : memref<16x128xf32, #tpu.memory_space<vmem>>, vector<16x128xf32>,
    } else {
    }
    return
  }
  func.func @transform_0(%arg0: i32, %arg1: i32) -> (i32, i32) {
    %c0_i32 = arith.constant 0 : i32
    %c0_i32_0 = arith.constant 0 : i32
    return %arg0, %c0_i32 : i32, i32
  }
  func.func @transform_1(%arg0: i32, %arg1: i32) -> (i32, i32) {
    %c0_i32 = arith.constant 0 : i32
    %c0_i32_0 = arith.constant 0 : i32
    return %c0_i32, %arg1 : i32, i32
  }
  func.func @transform_2(%arg0: i32, %arg1: i32) -> (i32, i32) {
    %c0_i32 = arith.constant 0 : i32
    %c0_i32_0 = arith.constant 0 : i32
    return %c0_i32, %arg1 : i32, i32
  }
  func.func @transform_3(%arg0: i32, %arg1: i32) -> (i32, i32) {
    %c0_i32 = arith.constant 0 : i32
    %c0_i32_0 = arith.constant 0 : i32
    return %arg1, %c0_i32 : i32, i32
  }
  func.func @transform_4(%arg0: i32, %arg1: i32) -> (i32, i32) {
    %c0_i32 = arith.constant 0 : i32
    %c0_i32_0 = arith.constant 0 : i32
    %c0_i32_1 = arith.constant 0 : i32
    return %c0_i32, %c0_i32_0 : i32, i32
  }
  func.func @transform_5(%arg0: i32, %arg1: i32) -> (i32, i32) {
    %c0_i32 = arith.constant 0 : i32
    %c0_i32_0 = arith.constant 0 : i32
    %c0_i32_1 = arith.constant 0 : i32
    return %c0_i32, %c0_i32_0 : i32, i32
  }
  func.func @transform_6(%arg0: i32, %arg1: i32) -> (i32, i32) {
    %c0_i32 = arith.constant 0 : i32
    %c0_i32_0 = arith.constant 0 : i32
    %c0_i32_1 = arith.constant 0 : i32
    return %c0_i32, %c0_i32_0 : i32, i32
  }
  func.func @transform_7(%arg0: i32, %arg1: i32) -> (i32, i32) {
    %c0_i32 = arith.constant 0 : i32
    %c0_i32_0 = arith.constant 0 : i32
    return %arg0, %c0_i32 : i32, i32
  }
}

</mosaic_0001>

<llo_original>
// kernel: tpu_custom_call.1
$region0: #{tpu_custom_call.1}
  #allocation0 [shape = 'u32[]', space=smem, size = 0x4, offset = 0x4, fixed_abs, tag = 'smem constant byte address 0x4 - core index']
  #allocation1 [shape = 'u32[72,128]{1,0:T(1,128)}', space=vmem, size = 0x9000, scoped, tag = 'internal scratch']
  #allocation2 [shape = 'f32[16,128]{1,0:T(8,128)}', space=vmem, size = 0x2000, scoped, tag = 'scratch operand']
  %s0 = inlined_call_operand.hbm [shape: bf16[16,128], index: 0, kind: input, shape index: {}]
  %s1 = inlined_call_operand.hbm [shape: bf16[128,256], index: 1, kind: input, shape index: {}]
  %s2 = inlined_call_operand.hbm [shape: f32[1,256], index: 2, kind: input, shape index: {}]
  %s3 = inlined_call_operand.hbm [shape: bf16[256,128], index: 3, kind: input, shape index: {}]
  %s4 = inlined_call_operand.vmem [shape: f32[1,128], index: 4, kind: input, shape index: {}]
  %s5 = inlined_call_operand.vmem [shape: f32[1,128], index: 5, kind: input, shape index: {}]
  %s6 = inlined_call_operand.vmem [shape: f32[1,128], index: 6, kind: input, shape index: {}]
  %s7 = inlined_call_operand.hbm [shape: f32[16,128], index: 7, kind: output, shape index: {}]
  %s8 = sld [smem:[#allocation0]]
  $region62: #{tpu_custom_call.1} parent=0
    _
  %s10 = ssub.s32 1, %s8
  %s11 = scalar_select 0, %s10, %s8
  $region1: #{tpu_custom_call.1} parent=0
    #allocation3 [shape = 'u8[4096]{0}', space=vmem, size = 0x1000, scoped, tag = 'input window, operand 0, single buffered']
    #allocation4 [shape = 's32[1]{0}', space=sflag, size = 0x4, scoped, tag = 'scoped memory for tpu_custom_call.1']
    #allocation5 [shape = 's32[1]{0}', space=sflag, size = 0x4, scoped, tag = 'scoped memory for tpu_custom_call.1']
    #allocation6 [shape = 'u8[65536]{0}', space=vmem, size = 0x10000, scoped, tag = 'input window, operand 1, single buffered']
    #allocation7 [shape = 's32[1]{0}', space=sflag, size = 0x4, scoped, tag = 'scoped memory for tpu_custom_call.1']
    #allocation8 [shape = 'u8[1024]{0}', space=vmem, size = 0x400, scoped, tag = 'input window, operand 2, single buffered']
    #allocation9 [shape = 'u8[65536]{0}', space=vmem, size = 0x10000, scoped, tag = 'input window, operand 3, single buffered']
    #allocation10 [shape = 's32[1]{0}', space=sflag, size = 0x4, scoped, tag = 'scoped memory for tpu_custom_call.1']
    #allocation11 [shape = 'u8[8192]{0}', space=vmem, size = 0x2000, scoped, tag = 'output window, operand 0, single buffered']
    %12 = vsyncpa [#allocation4], 0
    %13 = vsyncpa [#allocation7], 0
    %14 = vsyncpa [#allocation10], 0
    %15 = vsyncpa [#allocation5], 0
    // Predicated region
    $region2: #{tpu_custom_call.1} parent=1 // pred_check
      _
    $region3: #{tpu_custom_call.1} parent=1 // pred_check_branch
      %17 = sbr.rel (0) target = $region5
    $region4: #{tpu_custom_call.1} parent=1 // pred_region
      %19 = vsyncadd [#allocation4], 0
      %s20 = sshll.u32 %s0, 4
      %s21 = int_to_ptr.hbm [resolvable:$true] %s20
      %s22 = sshll.u32 [#allocation3], 4
      %s23 = int_to_ptr.vmem [resolvable:$true] %s22
      %28 = dma.hbm_to_vmem [thread:$0]  %s21, 128, %s23, [#allocation4], 64, 64, 4
    $region5: #{tpu_custom_call.1} parent=1 // pred_fallthru
      _
    // Predicated region
    $region6: #{tpu_custom_call.1} parent=1 // pred_check
      _
    $region7: #{tpu_custom_call.1} parent=1 // pred_check_branch
      %30 = sbr.rel (0) target = $region9
    $region8: #{tpu_custom_call.1} parent=1 // pred_region
      %32 = vsyncadd [#allocation7], 0
      %s33 = sshll.u32 %s1, 4
      %s34 = int_to_ptr.hbm [resolvable:$true] %s33
      %s35 = sshll.u32 [#allocation6], 4
      %s36 = int_to_ptr.vmem [resolvable:$true] %s35
      %41 = dma.hbm_to_vmem [thread:$0]  %s34, 2048, %s36, [#allocation7], 128, 128, 8
    $region9: #{tpu_custom_call.1} parent=1 // pred_fallthru
      _
    // Predicated region
    $region10: #{tpu_custom_call.1} parent=1 // pred_check
      _
    $region11: #{tpu_custom_call.1} parent=1 // pred_check_branch
      %43 = sbr.rel (0) target = $region13
    $region12: #{tpu_custom_call.1} parent=1 // pred_region
      %45 = vsyncadd [#allocation7], 0
      %s47 = sshll.u32 %s2, 4
      %s48 = int_to_ptr.hbm [resolvable:$true] %s47
      %s49 = sshll.u32 [#allocation8], 4
      %s50 = int_to_ptr.vmem [resolvable:$true] %s49
      %52 = dma.hbm_to_vmem [thread:$0]  %s48, 32, %s50, [#allocation7]
    $region13: #{tpu_custom_call.1} parent=1 // pred_fallthru
      _
    // Predicated region
    $region14: #{tpu_custom_call.1} parent=1 // pred_check
      _
    $region15: #{tpu_custom_call.1} parent=1 // pred_check_branch
      %54 = sbr.rel (0) target = $region17
    $region16: #{tpu_custom_call.1} parent=1 // pred_region
      %56 = vsyncadd [#allocation10], 0
      %s57 = sshll.u32 %s3, 4
      %s58 = int_to_ptr.hbm [resolvable:$true] %s57
      %s59 = sshll.u32 [#allocation9], 4
      %s60 = int_to_ptr.vmem [resolvable:$true] %s59
      %65 = dma.hbm_to_vmem [thread:$0]  %s58, 2048, %s60, [#allocation10], 64, 64, 4
    $region17: #{tpu_custom_call.1} parent=1 // pred_fallthru
      _
    // Predicated region
    $region18: #{tpu_custom_call.1} parent=1 // pred_check
      _
    $region19: #{tpu_custom_call.1} parent=1 // pred_check_branch
      %67 = sbr.rel (0) target = $region21
    $region20: #{tpu_custom_call.1} parent=1 // pred_region
      _
    $region21: #{tpu_custom_call.1} parent=1 // pred_fallthru
      _
    // Predicated region
    $region22: #{tpu_custom_call.1} parent=1 // pred_check
      _
    $region23: #{tpu_custom_call.1} parent=1 // pred_check_branch
      %69 = sbr.rel (0) target = $region25
    $region24: #{tpu_custom_call.1} parent=1 // pred_region
      _
    $region25: #{tpu_custom_call.1} parent=1 // pred_fallthru
      _
    // Predicated region
    $region26: #{tpu_custom_call.1} parent=1 // pred_check
      _
    $region27: #{tpu_custom_call.1} parent=1 // pred_check_branch
      %71 = sbr.rel (0) target = $region29
    $region28: #{tpu_custom_call.1} parent=1 // pred_region
      _
    $region29: #{tpu_custom_call.1} parent=1 // pred_fallthru
      _
    // Predicated region
    $region30: #{tpu_custom_call.1} parent=1 // pred_check
      _
    $region31: #{tpu_custom_call.1} parent=1 // pred_check_branch
      %73 = sbr.rel (0) target = $region33
    $region32: #{tpu_custom_call.1} parent=1 // pred_region
      %75 = dma.done [#allocation4], 128
    $region33: #{tpu_custom_call.1} parent=1 // pred_fallthru
      _
    // Predicated region
    $region34: #{tpu_custom_call.1} parent=1 // pred_check
      _
    $region35: #{tpu_custom_call.1} parent=1 // pred_check_branch
      %77 = sbr.rel (0) target = $region37
    $region36: #{tpu_custom_call.1} parent=1 // pred_region
      %79 = dma.done [#allocation7], 2048
    $region37: #{tpu_custom_call.1} parent=1 // pred_fallthru
      _
    // Predicated region
    $region38: #{tpu_custom_call.1} parent=1 // pred_check
      _
    $region39: #{tpu_custom_call.1} parent=1 // pred_check_branch
      %81 = sbr.rel (0) target = $region41
    $region40: #{tpu_custom_call.1} parent=1 // pred_region
      %83 = dma.done [#allocation7], 32
    $region41: #{tpu_custom_call.1} parent=1 // pred_fallthru
      _
    // Predicated region
    $region42: #{tpu_custom_call.1} parent=1 // pred_check
      _
    $region43: #{tpu_custom_call.1} parent=1 // pred_check_branch
      %85 = sbr.rel (0) target = $region45
    $region44: #{tpu_custom_call.1} parent=1 // pred_region
      %87 = dma.done [#allocation10], 2048
    $region45: #{tpu_custom_call.1} parent=1 // pred_fallthru
      _
    %p88 = scmp.eq.s32.totalorder 0, 0
    // Predicated region
    $region46: #{tpu_custom_call.1} parent=1 // pred_check
      %p89 = pneg %p88
    $region47: #{tpu_custom_call.1} parent=1 // pred_check_branch
      %91 = sbr.rel (%p89) target = $region49
    $region48: #{tpu_custom_call.1} parent=1 // pred_region
      %92 = vst [vmem:[#allocation2] sm:$0xff] 0.0
      %93 = vst [vmem:[#allocation2 + $0x8] sm:$0xff] 0.0
    $region49: #{tpu_custom_call.1} parent=1 // pred_fallthru
      _
    %v94 = vld [vmem:[#allocation3] sm:$0xf]
    %v95 = vld [vmem:[#allocation3 + $0x4] sm:$0xf]
    %v96 = vld [vmem:[#allocation6] sm:$0xff]
    %v97 = vld [vmem:[#allocation6 + $0x8] sm:$0xff]
    %v98 = vld [vmem:[#allocation6 + $0x10] sm:$0xff]
    %v99 = vld [vmem:[#allocation6 + $0x18] sm:$0xff]
    %v100 = vld [vmem:[#allocation6 + $0x20] sm:$0xff]
    %v101 = vld [vmem:[#allocation6 + $0x28] sm:$0xff]
    %v102 = vld [vmem:[#allocation6 + $0x30] sm:$0xff]
    %v103 = vld [vmem:[#allocation6 + $0x38] sm:$0xff]
    %v104 = vld [vmem:[#allocation6 + $0x40] sm:$0xff]
    %v105 = vld [vmem:[#allocation6 + $0x48] sm:$0xff]
    %v106 = vld [vmem:[#allocation6 + $0x50] sm:$0xff]
    %v107 = vld [vmem:[#allocation6 + $0x58] sm:$0xff]
    %v108 = vld [vmem:[#allocation6 + $0x60] sm:$0xff]
    %v109 = vld [vmem:[#allocation6 + $0x68] sm:$0xff]
    %v110 = vld [vmem:[#allocation6 + $0x70] sm:$0xff]
    %v111 = vld [vmem:[#allocation6 + $0x78] sm:$0xff]
    %v112 = vld [vmem:[#allocation8] sm:$0x3]
    %v114 = vperm.slane %v112, 0
    %v115 = vperm.slane %v112, 1
    %v120 = vunpack.c.l.b16 %v94
    %v121 = vunpack.c.l.b16 %v95
    %v122 = vpack.c.b16 %v121, %v120
    %v140 = vunpack.c.l.b16 %v96
    %v141 = vunpack.c.h.b16 %v96
    %v142 = vunpack.c.l.b16 %v97
    %v143 = vunpack.c.h.b16 %v97
    %v144 = vunpack.c.l.b16 %v98
    %v145 = vunpack.c.h.b16 %v98
    %v146 = vunpack.c.l.b16 %v99
    %v147 = vunpack.c.h.b16 %v99
    %v148 = vunpack.c.l.b16 %v100
    %v149 = vunpack.c.h.b16 %v100
    %v150 = vunpack.c.l.b16 %v101
    %v151 = vunpack.c.h.b16 %v101
    %v152 = vunpack.c.l.b16 %v102
    %v153 = vunpack.c.h.b16 %v102
    %v154 = vunpack.c.l.b16 %v103
    %v155 = vunpack.c.h.b16 %v103
    %v156 = vunpack.c.l.b16 %v104
    %v157 = vunpack.c.h.b16 %v104
    %v158 = vunpack.c.l.b16 %v105
    %v159 = vunpack.c.h.b16 %v105
    %v160 = vunpack.c.l.b16 %v106
    %v161 = vunpack.c.h.b16 %v106
    %v162 = vunpack.c.l.b16 %v107
    %v163 = vunpack.c.h.b16 %v107
    %v164 = vunpack.c.l.b16 %v108
    %v165 = vunpack.c.h.b16 %v108
    %v166 = vunpack.c.l.b16 %v109
    %v167 = vunpack.c.h.b16 %v109
    %v168 = vunpack.c.l.b16 %v110
    %v169 = vunpack.c.h.b16 %v110
    %v170 = vunpack.c.l.b16 %v111
    %v171 = vunpack.c.h.b16 %v111
    %v172 = vpack.c.b16 %v142, %v140
    %v173 = vpack.c.b16 %v143, %v141
    %v174 = vpack.c.b16 %v146, %v144
    %v175 = vpack.c.b16 %v147, %v145
    %v176 = vpack.c.b16 %v150, %v148
    %v177 = vpack.c.b16 %v151, %v149
    %v178 = vpack.c.b16 %v154, %v152
    %v179 = vpack.c.b16 %v155, %v153
    %v180 = vpack.c.b16 %v158, %v156
    %v181 = vpack.c.b16 %v159, %v157
    %v182 = vpack.c.b16 %v162, %v160
    %v183 = vpack.c.b16 %v163, %v161
    %v184 = vpack.c.b16 %v166, %v164
    %v185 = vpack.c.b16 %v167, %v165
    %v186 = vpack.c.b16 %v170, %v168
    %v187 = vpack.c.b16 %v171, %v169
    %204 = vmatpush.bf16.msra.mxu0 %v186
    %205 = vmatpush.bf16.msra.mxu0 %v184
    %206 = vmatpush.bf16.msra.mxu0 %v182
    %207 = vmatpush.bf16.msra.mxu0 %v180
    %208 = vmatpush.bf16.msra.mxu0 %v178
    %209 = vmatpush.bf16.msra.mxu0 %v176
    %210 = vmatpush.bf16.msra.mxu0 %v174
    %211 = vmatpush.bf16.msra.mxu0 %v172
    %212 = vmatmul.bf16.gmra.mxu0 %v122
    %v213 = vpop.f32.mrf.mxu0
    %v214 = vadd.f32 %v114, %v213
    %v215 = vpop.f32.mrf.mxu0
    %v216 = vadd.f32 %v114, %v215
    %217 = vdwg.mxu0
    %218 = vmatpush.bf16.msra.mxu0 %v187
    %219 = vmatpush.bf16.msra.mxu0 %v185
    %220 = vmatpush.bf16.msra.mxu0 %v183
    %221 = vmatpush.bf16.msra.mxu0 %v181
    %222 = vmatpush.bf16.msra.mxu0 %v179
    %223 = vmatpush.bf16.msra.mxu0 %v177
    %224 = vmatpush.bf16.msra.mxu0 %v175
    %225 = vmatpush.bf16.msra.mxu0 %v173
    %226 = vmatmul.bf16.gmra.mxu0 %v122
    %v227 = vpop.f32.mrf.mxu0
    %v228 = vadd.f32 %v115, %v227
    %v229 = vpop.f32.mrf.mxu0
    %v230 = vadd.f32 %v115, %v229
    %231 = vdwg.mxu0
    %v232 = vmax.f32 %v214, 0.0
    %v233 = vmax.f32 %v228, 0.0
    %v234 = vmax.f32 %v216, 0.0
    %v235 = vmax.f32 %v230, 0.0
    %v236 = vld [vmem:[#allocation2] sm:$0xff]
    %v237 = vld [vmem:[#allocation2 + $0x8] sm:$0xff]
    %v238 = vpack.c.bf16 %v234, %v232
    %v239 = vpack.c.bf16 %v235, %v233
    %v240 = vld [vmem:[#allocation9] sm:$0xf]
    %v241 = vld [vmem:[#allocation9 + $0x4] sm:$0xf]
    %v242 = vld [vmem:[#allocation9 + $0x8] sm:$0xf]
    %v243 = vld [vmem:[#allocation9 + $0xc] sm:$0xf]
    %v244 = vld [vmem:[#allocation9 + $0x10] sm:$0xf]
    %v245 = vld [vmem:[#allocation9 + $0x14] sm:$0xf]
    %v246 = vld [vmem:[#allocation9 + $0x18] sm:$0xf]
    %v247 = vld [vmem:[#allocation9 + $0x1c] sm:$0xf]
    %v248 = vld [vmem:[#allocation9 + $0x20] sm:$0xf]
    %v249 = vld [vmem:[#allocation9 + $0x24] sm:$0xf]
    %v250 = vld [vmem:[#allocation9 + $0x28] sm:$0xf]
    %v251 = vld [vmem:[#allocation9 + $0x2c] sm:$0xf]
    %v252 = vld [vmem:[#allocation9 + $0x30] sm:$0xf]
    %v253 = vld [vmem:[#allocation9 + $0x34] sm:$0xf]
    %v254 = vld [vmem:[#allocation9 + $0x38] sm:$0xf]
    %v255 = vld [vmem:[#allocation9 + $0x3c] sm:$0xf]
    %v256 = vld [vmem:[#allocation9 + $0x40] sm:$0xf]
    %v257 = vld [vmem:[#allocation9 + $0x44] sm:$0xf]
    %v258 = vld [vmem:[#allocation9 + $0x48] sm:$0xf]
    %v259 = vld [vmem:[#allocation9 + $0x4c] sm:$0xf]
    %v260 = vld [vmem:[#allocation9 + $0x50] sm:$0xf]
    %v261 = vld [vmem:[#allocation9 + $0x54] sm:$0xf]
    %v262 = vld [vmem:[#allocation9 + $0x58] sm:$0xf]
    %v263 = vld [vmem:[#allocation9 + $0x5c] sm:$0xf]
    %v264 = vld [vmem:[#allocation9 + $0x60] sm:$0xf]
    %v265 = vld [vmem:[#allocation9 + $0x64] sm:$0xf]
    %v266 = vld [vmem:[#allocation9 + $0x68] sm:$0xf]
    %v267 = vld [vmem:[#allocation9 + $0x6c] sm:$0xf]
    %v268 = vld [vmem:[#allocation9 + $0x70] sm:$0xf]
    %v269 = vld [vmem:[#allocation9 + $0x74] sm:$0xf]
    %v270 = vld [vmem:[#allocation9 + $0x78] sm:$0xf]
    %v271 = vld [vmem:[#allocation9 + $0x7c] sm:$0xf]
    %v304 = vunpack.c.l.b16 %v240
    %v305 = vunpack.c.l.b16 %v241
    %v306 = vunpack.c.l.b16 %v242
    %v307 = vunpack.c.l.b16 %v243
    %v308 = vunpack.c.l.b16 %v244
    %v309 = vunpack.c.l.b16 %v245
    %v310 = vunpack.c.l.b16 %v246
    %v311 = vunpack.c.l.b16 %v247
    %v312 = vunpack.c.l.b16 %v248
    %v313 = vunpack.c.l.b16 %v249
    %v314 = vunpack.c.l.b16 %v250
    %v315 = vunpack.c.l.b16 %v251
    %v316 = vunpack.c.l.b16 %v252
    %v317 = vunpack.c.l.b16 %v253
    %v318 = vunpack.c.l.b16 %v254
    %v319 = vunpack.c.l.b16 %v255
    %v320 = vunpack.c.l.b16 %v256
    %v321 = vunpack.c.l.b16 %v257
    %v322 = vunpack.c.l.b16 %v258
    %v323 = vunpack.c.l.b16 %v259
    %v324 = vunpack.c.l.b16 %v260
    %v325 = vunpack.c.l.b16 %v261
    %v326 = vunpack.c.l.b16 %v262
    %v327 = vunpack.c.l.b16 %v263
    %v328 = vunpack.c.l.b16 %v264
    %v329 = vunpack.c.l.b16 %v265
    %v330 = vunpack.c.l.b16 %v266
    %v331 = vunpack.c.l.b16 %v267
    %v332 = vunpack.c.l.b16 %v268
    %v333 = vunpack.c.l.b16 %v269
    %v334 = vunpack.c.l.b16 %v270
    %v335 = vunpack.c.l.b16 %v271
    %v336 = vpack.c.b16 %v305, %v304
    %v337 = vpack.c.b16 %v307, %v306
    %v338 = vpack.c.b16 %v309, %v308
    %v339 = vpack.c.b16 %v311, %v310
    %v340 = vpack.c.b16 %v313, %v312
    %v341 = vpack.c.b16 %v315, %v314
    %v342 = vpack.c.b16 %v317, %v316
    %v343 = vpack.c.b16 %v319, %v318
    %v344 = vpack.c.b16 %v321, %v320
    %v345 = vpack.c.b16 %v323, %v322
    %v346 = vpack.c.b16 %v325, %v324
    %v347 = vpack.c.b16 %v327, %v326
    %v348 = vpack.c.b16 %v329, %v328
    %v349 = vpack.c.b16 %v331, %v330
    %v350 = vpack.c.b16 %v333, %v332
    %v351 = vpack.c.b16 %v335, %v334
    %368 = vmatpush.bf16.msra.mxu0 %v343
    %369 = vmatpush.bf16.msra.mxu0 %v342
    %370 = vmatpush.bf16.msra.mxu0 %v341
    %371 = vmatpush.bf16.msra.mxu0 %v340
    %372 = vmatpush.bf16.msra.mxu0 %v339
    %373 = vmatpush.bf16.msra.mxu0 %v338
    %374 = vmatpush.bf16.msra.mxu0 %v337
    %375 = vmatpush.bf16.msra.mxu0 %v336
    %376 = vmatmul.bf16.gmra.mxu0 %v238
    %v377 = vpop.f32.mrf.mxu0
    %v378 = vadd.f32 0.0, %v377
    %v379 = vpop.f32.mrf.mxu0
    %v380 = vadd.f32 0.0, %v379
    %381 = vdwg.mxu0
    %382 = vmatpush.bf16.msra.mxu0 %v351
    %383 = vmatpush.bf16.msra.mxu0 %v350
    %384 = vmatpush.bf16.msra.mxu0 %v349
    %385 = vmatpush.bf16.msra.mxu0 %v348
    %386 = vmatpush.bf16.msra.mxu0 %v347
    %387 = vmatpush.bf16.msra.mxu0 %v346
    %388 = vmatpush.bf16.msra.mxu0 %v345
    %389 = vmatpush.bf16.msra.mxu0 %v344
    %390 = vmatmul.bf16.gmra.mxu0 %v239
    %v391 = vpop.f32.mrf.mxu0
    %v392 = vadd.f32 %v378, %v391
    %v393 = vpop.f32.mrf.mxu0
    %v394 = vadd.f32 %v380, %v393
    %395 = vdwg.mxu0
    %v396 = vadd.f32 %v236, %v392
    %v397 = vadd.f32 %v237, %v394
    %398 = vst [vmem:[#allocation2] sm:$0xff] %v396
    %399 = vst [vmem:[#allocation2 + $0x8] sm:$0xff] %v397
    // Predicated region
    $region50: #{tpu_custom_call.1} parent=1 // pred_check
      %p400 = pneg %p88
    $region51: #{tpu_custom_call.1} parent=1 // pred_check_branch
      %402 = sbr.rel (%p400) target = $region53
    $region52: #{tpu_custom_call.1} parent=1 // pred_region
      %v403 = vld [vmem:[#allocation3] sm:$0xf]
      %v404 = vld [vmem:[#allocation3 + $0x4] sm:$0xf]
      %v405 = vunpack.c.l.bf16 %v403
      %v406 = vunpack.c.l.bf16 %v404
      %v407 = vld [vmem:[#allocation2] sm:$0xff]
      %v408 = vld [vmem:[#allocation2 + $0x8] sm:$0xff]
      %v409 = vadd.f32 %v405, %v407
      %v410 = vadd.f32 %v406, %v408
      %v411 = vld [vmem:[%s4] sm:$0x1]
      %v413 = vperm.slane %v411, 0
      %v415 = vadd.f32 %v409, %v413
      %v416 = vadd.f32 %v410, %v413
      %417 = vadd.xlane.f32.xlu0 %v415
      %v418 = vpop.xlane.xlu0 %417
      %419 = vadd.xlane.f32.xlu0 %v416
      %v420 = vpop.xlane.xlu0 %419
      %v421 = vrcp.pop 128.0
      %v422 = vmul.f32 128.0, %v421
      %v423 = vsub.f32 1.0, %v422
      %v424 = vmul.f32 %v421, %v423
      %v425 = vadd.f32 %v421, %v424
      %vm426 = vweird.f32 %v421
      %v427 = vsel %vm426, %v421, %v425
      %v428 = vmul.f32 %v418, %v427
      %v429 = vmul.f32 %v420, %v427
      %v430 = vmul.f32 %v415, %v415
      %v431 = vmul.f32 %v416, %v416
      %432 = vadd.xlane.f32.xlu0 %v430
      %v433 = vpop.xlane.xlu0 %432
      %434 = vadd.xlane.f32.xlu0 %v431
      %v435 = vpop.xlane.xlu0 %434
      %v436 = vmul.f32 %v433, %v427
      %v437 = vmul.f32 %v435, %v427
      %v438 = vmul.f32 %v428, %v428
      %v439 = vmul.f32 %v429, %v429
      %v440 = vsub.f32 %v436, %v438
      %v441 = vsub.f32 %v437, %v439
      %v442 = vmax.f32 %v440, 0.0
      %v443 = vmax.f32 %v441, 0.0
      %v444 = vsub.f32 %v415, %v428
      %v445 = vsub.f32 %v416, %v429
      %v446 = vadd.f32 %v442, 1e-05
      %v447 = vadd.f32 %v443, 1e-05
      %v448 = vrsqrt.pop %v446
      %v449 = vmul.f32 %v448, %v446
      %v450 = vmul.f32 %v449, %v448
      %v451 = vmul.f32 0.5, %v450
      %v452 = vsub.f32 1.5, %v451
      %v453 = vmul.f32 %v448, %v452
      %vm454 = vweird.f32 %v446
      %vm455 = vweird.f32 %v448
      %vm456 = vmor %vm454, %vm455
      %v457 = vsel %vm456, %v448, %v453
      %v458 = vrsqrt.pop %v447
      %v459 = vmul.f32 %v458, %v447
      %v460 = vmul.f32 %v459, %v458
      %v461 = vmul.f32 0.5, %v460
      %v462 = vsub.f32 1.5, %v461
      %v463 = vmul.f32 %v458, %v462
      %vm464 = vweird.f32 %v447
      %vm465 = vweird.f32 %v458
      %vm466 = vmor %vm464, %vm465
      %v467 = vsel %vm466, %v458, %v463
      %v468 = vmul.f32 %v444, %v457
      %v469 = vmul.f32 %v445, %v467
      %v470 = vld [vmem:[%s5] sm:$0x1]
      %v472 = vperm.slane %v470, 0
      %v474 = vmul.f32 %v468, %v472
      %v475 = vmul.f32 %v469, %v472
      %v476 = vld [vmem:[%s6] sm:$0x1]
      %v478 = vperm.slane %v476, 0
      %v480 = vadd.f32 %v474, %v478
      %v481 = vadd.f32 %v475, %v478
      %482 = vst [vmem:[#allocation11] sm:$0xff] %v480
      %483 = vst [vmem:[#allocation11 + $0x8] sm:$0xff] %v481
    $region53: #{tpu_custom_call.1} parent=1 // pred_fallthru
      _
    // Predicated region
    $region54: #{tpu_custom_call.1} parent=1 // pred_check
      _
    $region55: #{tpu_custom_call.1} parent=1 // pred_check_branch
      %485 = sbr.rel (0) target = $region57
    $region56: #{tpu_custom_call.1} parent=1 // pred_region
      %487 = vsyncadd [#allocation5], 0
      %s488 = sshll.u32 [#allocation11], 4
      %s489 = int_to_ptr.vmem [resolvable:$true] %s488
      %s490 = sshll.u32 %s7, 4
      %s491 = int_to_ptr.hbm [resolvable:$true] %s490
      %496 = dma.vmem_to_hbm [thread:$0]  %s489, 256, %s491, [#allocation5], 128, 128, 8
    $region57: #{tpu_custom_call.1} parent=1 // pred_fallthru
      _
    // Predicated region
    $region58: #{tpu_custom_call.1} parent=1 // pred_check
      _
    $region59: #{tpu_custom_call.1} parent=1 // pred_check_branch
      %498 = sbr.rel (0) target = $region61
    $region60: #{tpu_custom_call.1} parent=1 // pred_region
      %500 = dma.done [#allocation5], 256
    $region61: #{tpu_custom_call.1} parent=1 // pred_fallthru
      _
    %501 = vsyncpa [#allocation4], 1
    %502 = vsyncpa [#allocation7], 1
    %503 = vsyncpa [#allocation10], 1
    %504 = vsyncpa [#allocation5], 1

</llo_original>
